<compile_context>
chip_gen: v6e
topology: v6e:2x2x1
jax: 0.10.0
libtpu: 0.0.40
codegen_flags: <defaults>
</compile_context>

<pallas_src>
import functools

import jax
import jax.numpy as jnp
from jax import lax
from jax.experimental import pallas as pl
from jax.experimental.pallas import tpu as pltpu

_NEG_BIG = -1e30  # bias for padded class columns -> exp underflows to exactly 0


def _round_up(n, m):
    return ((n + m - 1) // m) * m


def _default_exp_dtype():
    """bf16 exp on v6e/v7x (doubles EUP throughput); f32 elsewhere (v5e EUP
    has no bf16 path). Conservative f32 fallback if the device is unknown."""
    try:
        kind = jax.devices()[0].device_kind.lower()
    except Exception:
        return jnp.float32
    return jnp.bfloat16 if ("v6" in kind or "v7" in kind) else jnp.float32


def _const_spec(shape, index_map):
    """Weight/bias blocks: constant index_map => single-buffer them (saves a
    full weight copy of VMEM, which matters on v7x's 64 MiB budget)."""
    try:
        return pl.BlockSpec(shape, index_map, pipeline_mode=pl.Buffered(1))
    except (AttributeError, TypeError):
        return pl.BlockSpec(shape, index_map)


def _pick_token_tile(T):
    """Full T when small; otherwise a 128-multiple that divides T so the GTC
    logits/softmax working set (~TT*NGP f32) stays comfortably in VMEM."""
    if T <= 1024:
        return T, 1
    for tt in (512, 384, 256, 128):
        if T % tt == 0:
            return tt, T // tt
    return T, 1  # TODO(synk): pad T to a 128-multiple for ragged production shapes


def _vmem_limit_bytes(C, TT, W, ngp, ncp):
    f32, bf16 = 4, 2
    stream = 2 * (C * TT * f32          # x block (double-buffered input stream)
                  + TT * W * bf16       # pooling-matrix block
                  + TT * ngp * bf16     # gtc output block
                  + W * ncp * bf16)     # ctc output block
    resident = (C * ngp + C * ncp) * bf16 + (ngp + ncp) * f32  # single-buffered weights
    scratch = C * W * f32
    interm = 2 * TT * ngp * f32         # logits + exp live values
    total = stream + resident + scratch + interm
    return int(min(max(total * 3 // 2 + (4 << 20), 32 << 20), 112 << 20))


def _softmax_last(logits, exp_dtype):
    """logits: f32 (rows, Npad); padded columns carry a -1e30 bias -> exact 0."""
    m = jnp.max(logits, axis=-1, keepdims=True)
    e = jnp.exp((logits - m).astype(exp_dtype))
    s = jnp.sum(e, axis=-1, keepdims=True, dtype=jnp.float32)
    # approx reciprocal lowers to the otherwise-idle EUP slot
    return e * pl.reciprocal(s, approx=True)


def _fused_heads_kernel(x_ref, pm_ref, gw_ref, gb_ref, cw_ref, cb_ref,
                        gtc_ref, ctc_ref, acc_ref, *, exp_dtype):
    """Grid = (batch, token_tile).

    x_ref  : (1, C, TT)    f32   NCHW tokens (token dim on lanes) — read once
    pm_ref : (TT, W)       bf16  1/H pooling matrix rows for this token tile
    gw_ref : (C, NGP)      bf16  gtc weight, class dim zero-padded to 128*k
    gb_ref : (1, NGP)      f32   gtc bias, padded cols = -1e30
    cw_ref : (C, NCP)      bf16  ctc weight, padded
    cb_ref : (1, NCP)      f32   ctc bias, padded cols = -1e30
    gtc_ref: (1, TT, NGP)  bf16
    ctc_ref: (1, W, NCP)   bf16  (resident across the token axis)
    acc_ref: (C, W)        f32   scratch: H-pool accumulator
    """
    t = pl.program_id(1)
    nt = pl.num_programs(1)

    xb = x_ref[0].astype(jnp.bfloat16)                       # (C, TT)

    # ---- GTC head: per-token linear + softmax (transposed-LHS matmul) ------
    g_logits = lax.dot_general(
        xb, gw_ref[...], (((0,), (0,)), ((), ())),
        preferred_element_type=jnp.float32) + gb_ref[...]    # (TT, NGP)
    gtc_ref[0] = _softmax_last(g_logits, exp_dtype).astype(gtc_ref.dtype)

    # ---- CTC head: accumulate the 1/H pool across token tiles --------------
    @pl.when(t == 0)
    def _():
        acc_ref[...] = jnp.zeros_like(acc_ref)

    acc_ref[...] += jnp.dot(xb, pm_ref[...],
                            preferred_element_type=jnp.float32)   # (C, W)

    @pl.when(t == nt - 1)
    def _():
        pooled = acc_ref[...].astype(jnp.bfloat16)            # (C, W)
        c_logits = lax.dot_general(
            pooled, cw_ref[...], (((0,), (0,)), ((), ())),
            preferred_element_type=jnp.float32) + cb_ref[...]  # (W, NCP)
        ctc_ref[0] = _softmax_last(c_logits, exp_dtype).astype(ctc_ref.dtype)


def _ctc_only_kernel(x_ref, pm_ref, cw_ref, cb_ref, ctc_ref, *, exp_dtype):
    xb = x_ref[0].astype(jnp.bfloat16)                         # (C, T)
    pooled = jnp.dot(xb, pm_ref[...],
                     preferred_element_type=jnp.float32).astype(jnp.bfloat16)
    logits = lax.dot_general(
        pooled, cw_ref[...], (((0,), (0,)), ((), ())),
        preferred_element_type=jnp.float32) + cb_ref[...]
    ctc_ref[0] = _softmax_last(logits, exp_dtype).astype(ctc_ref.dtype)


def _pad_head(w, b):
    """Zero-pad class columns to a lane multiple of 128; padded bias = -1e30."""
    c, n = w.shape
    n_pad = _round_up(n, 128)
    wp = jnp.zeros((c, n_pad), jnp.float32).at[:, :n].set(w.astype(jnp.float32))
    bp = jnp.full((1, n_pad), _NEG_BIG, jnp.float32).at[:, :n].set(
        b.reshape(1, n).astype(jnp.float32))
    return wp.astype(jnp.bfloat16), bp, n_pad


def gtc_decoder_forward(x, params, detach=True, infer_gtc=True):
    """x: (B, C, H, W) float32 feature map (PyTorch NCHW convention)."""
    del detach  # stop_gradient only affects backward; forward value is identical
    # TODO(synk): add a custom VJP if gradients through the GTC branch are needed.
    B, C, H, W = x.shape
    T = H * W
    n_ctc = params["ctc_w"].shape[1]

    # Free reshape (contiguous view) — NO relayout pass; kernel reads f32 once.
    x_tok = x.reshape(B, C, T)

    exp_dtype = _default_exp_dtype()
    # 1/H pooling matrix: pooled[c, w] = sum_t x[c, t] * pm[t, w] = mean over H.
    pool_mat = (jnp.tile(jnp.eye(W, dtype=jnp.float32), (H, 1)) / H
                ).astype(jnp.bfloat16)                          # (T, W)

    cw, cb, ncp = _pad_head(params["ctc_w"], params["ctc_b"])

    if not infer_gtc:
        ctc_padded = pl.pallas_call(
            functools.partial(_ctc_only_kernel, exp_dtype=exp_dtype),
            out_shape=jax.ShapeDtypeStruct((B, W, ncp), jnp.bfloat16),
            grid=(B,),
            in_specs=[
                pl.BlockSpec((1, C, T), lambda b: (b, 0, 0)),
                _const_spec((T, W), lambda b: (0, 0)),
                _const_spec((C, ncp), lambda b: (0, 0)),
                _const_spec((1, ncp), lambda b: (0, 0)),
            ],
            out_specs=pl.BlockSpec((1, W, ncp), lambda b: (b, 0, 0)),
            compiler_params=pltpu.CompilerParams(
                dimension_semantics=("parallel",),
                vmem_limit_bytes=_vmem_limit_bytes(C, T, W, 0, ncp)),
        )(x_tok, pool_mat, cw, cb)
        return ctc_padded[:, :, :n_ctc]

    gw, gb, ngp = _pad_head(params["gtc_w"], params["gtc_b"])
    n_gtc = params["gtc_w"].shape[1]
    TT, NT = _pick_token_tile(T)

    gtc_padded, ctc_padded = pl.pallas_call(
        functools.partial(_fused_heads_kernel, exp_dtype=exp_dtype),
        out_shape=(
            jax.ShapeDtypeStruct((B, T, ngp), jnp.bfloat16),
            jax.ShapeDtypeStruct((B, W, ncp), jnp.bfloat16),
        ),
        grid=(B, NT),
        in_specs=[
            pl.BlockSpec((1, C, TT), lambda b, t: (b, 0, t)),
            pl.BlockSpec((TT, W), lambda b, t: (t, 0)),
            _const_spec((C, ngp), lambda b, t: (0, 0)),
            _const_spec((1, ngp), lambda b, t: (0, 0)),
            _const_spec((C, ncp), lambda b, t: (0, 0)),
            _const_spec((1, ncp), lambda b, t: (0, 0)),
        ],
        out_specs=(
            pl.BlockSpec((1, TT, ngp), lambda b, t: (b, t, 0)),
            pl.BlockSpec((1, W, ncp), lambda b, t: (b, 0, 0)),
        ),
        scratch_shapes=[pltpu.VMEM((C, W), jnp.float32)],
        compiler_params=pltpu.CompilerParams(
            # Token axis is "arbitrary": the CTC pool accumulates across it and
            # its output block is revisited. Batch axis shards across TCs.
            dimension_semantics=("parallel", "arbitrary"),
            vmem_limit_bytes=_vmem_limit_bytes(C, TT, W, ngp, ncp)),
    )(x_tok, pool_mat, gw, gb, cw, cb)

    return {"gtc_pred": gtc_padded[:, :, :n_gtc],
            "ctc_pred": ctc_padded[:, :, :n_ctc]}


def _reference(x, params):
    B, C, H, W = x.shape
    feat = jnp.transpose(jnp.mean(x, axis=2), (0, 2, 1))            # (B, W, C)
    ctc = jax.nn.softmax(feat @ params["ctc_w"] + params["ctc_b"][0], axis=-1)
    tok = jnp.transpose(x.reshape(B, C, H * W), (0, 2, 1))          # (B, T, C)
    gtc = jax.nn.softmax(tok @ params["gtc_w"] + params["gtc_b"][0], axis=-1)
    return {"gtc_pred": gtc, "ctc_pred": ctc}


if __name__ == "__main__":
    B, C, H, W = 2, 32, 4, 16
    n_gtc, n_ctc = 37, 40          # out_channels = (gtc_classes, ctc_classes)

    key = jax.random.PRNGKey(0)
    kx, k1, k2, k3, k4 = jax.random.split(key, 5)

    x = jax.random.normal(kx, (B, C, H, W), dtype=jnp.float32)
    params = {
        "ctc_w": jax.random.normal(k1, (C, n_ctc), dtype=jnp.float32) * 0.05,
        "ctc_b": jax.random.normal(k2, (1, n_ctc), dtype=jnp.float32) * 0.01,
        "gtc_w": jax.random.normal(k3, (C, n_gtc), dtype=jnp.float32) * 0.05,
        "gtc_b": jax.random.normal(k4, (1, n_gtc), dtype=jnp.float32) * 0.01,
    }

    out = gtc_decoder_forward(x, params, detach=True, infer_gtc=True)
    jax.block_until_ready(out)

    ref = _reference(x, params)
    assert out["ctc_pred"].shape == (B, W, n_ctc)
    assert out["gtc_pred"].shape == (B, H * W, n_gtc)
    # bf16 MXU feed + bf16 outputs + EUP approx reciprocal vs pure-f32 reference.
    assert jnp.allclose(out["ctc_pred"].astype(jnp.float32), ref["ctc_pred"], atol=2e-2)
    assert jnp.allclose(out["gtc_pred"].astype(jnp.float32), ref["gtc_pred"], atol=2e-2)

    # infer_gtc=False path (returns only ctc_pred)
    ctc_only = gtc_decoder_forward(x, params, detach=True, infer_gtc=False)
    jax.block_until_ready(ctc_only)
    assert ctc_only.shape == (B, W, n_ctc)
    assert jnp.allclose(ctc_only.astype(jnp.float32), ref["ctc_pred"], atol=2e-2)

    print("KERNEL_OK")
</pallas_src>

<mosaic_0001>
module attributes {stable_mosaic.version = 11 : i64} {
  func.func @_fused_heads_kernel(%arg0: i32, %arg1: i32, %arg2: memref<1x32x64xf32, #tpu.memory_space<vmem>>, %arg3: memref<64x16xbf16, #tpu.memory_space<vmem>>, %arg4: memref<32x128xbf16, #tpu.memory_space<vmem>>, %arg5: memref<1x128xf32, #tpu.memory_space<vmem>>, %arg6: memref<32x128xbf16, #tpu.memory_space<vmem>>, %arg7: memref<1x128xf32, #tpu.memory_space<vmem>>, %arg8: memref<1x64x128xbf16, #tpu.memory_space<vmem>>, %arg9: memref<1x16x128xbf16, #tpu.memory_space<vmem>>, %arg10: memref<32x16xf32, #tpu.memory_space<vmem>>) attributes {dimension_semantics = [#tpu.dimension_semantics<parallel>, #tpu.dimension_semantics<arbitrary>], iteration_bounds = array<i64: 2, 1>, scalar_prefetch = 0 : i64, scratch_operands = 1 : i64, tpu.core_type = #tpu.core_type<tc>, window_params = [{transform_indices = @transform_0, window_bounds = array<i64: 1, 32, 64>}, {transform_indices = @transform_1, window_bounds = array<i64: 64, 16>}, {pipeline_mode = #tpu.pipeline_mode<synchronous>, transform_indices = @transform_2, window_bounds = array<i64: 32, 128>}, {pipeline_mode = #tpu.pipeline_mode<synchronous>, transform_indices = @transform_3, window_bounds = array<i64: 1, 128>}, {pipeline_mode = #tpu.pipeline_mode<synchronous>, transform_indices = @transform_4, window_bounds = array<i64: 32, 128>}, {pipeline_mode = #tpu.pipeline_mode<synchronous>, transform_indices = @transform_5, window_bounds = array<i64: 1, 128>}, {transform_indices = @transform_6, window_bounds = array<i64: 1, 64, 128>}, {transform_indices = @transform_7, window_bounds = array<i64: 1, 16, 128>}]} {
    %c0 = arith.constant 0 : index
    %c0_0 = arith.constant 0 : index
    %c0_1 = arith.constant 0 : index
    %0 = vector.load %arg2[%c0, %c0_0, %c0_1] : memref<1x32x64xf32, #tpu.memory_space<vmem>>, vector<1x32x64xf32>
    %1 = vector.shape_cast %0 : vector<1x32x64xf32> to vector<32x64xf32>
    %2 = arith.truncf %1 : vector<32x64xf32> to vector<32x64xbf16>
    %c0_2 = arith.constant 0 : index
    %c0_3 = arith.constant 0 : index
    %3 = vector.load %arg4[%c0_2, %c0_3] : memref<32x128xbf16, #tpu.memory_space<vmem>>, vector<32x128xbf16>
    %cst = arith.constant dense<0.000000e+00> : vector<64x128xf32>
    %4 = tpu.matmul %2, %3, %cst {dimension_numbers = #tpu.dot_dimension_numbers<[0], [0], [1], [1], [0, 1, 1, 1], [], []>} : vector<32x64xbf16>, vector<32x128xbf16>, vector<64x128xf32> -> vector<64x128xf32>
    %c0_4 = arith.constant 0 : index
    %c0_5 = arith.constant 0 : index
    %5 = vector.load %arg5[%c0_4, %c0_5] : memref<1x128xf32, #tpu.memory_space<vmem>>, vector<1x128xf32>
    %6 = vector.broadcast %5 : vector<1x128xf32> to vector<64x128xf32>
    %7 = arith.addf %4, %6 : vector<64x128xf32>
    %cst_6 = arith.constant dense<0xFF800000> : vector<64xf32>
    %8 = vector.multi_reduction <maximumf>, %7, %cst_6 [1] : vector<64x128xf32> to vector<64xf32>
    %9 = vector.shape_cast %8 : vector<64xf32> to vector<64x1xf32>
    %10 = vector.broadcast %9 : vector<64x1xf32> to vector<64x128xf32>
    %11 = arith.subf %7, %10 : vector<64x128xf32>
    %12 = math.exp %11 : vector<64x128xf32>
    %cst_7 = arith.constant dense<0.000000e+00> : vector<64xf32>
    %13 = vector.multi_reduction <add>, %12, %cst_7 [1] : vector<64x128xf32> to vector<64xf32>
    %14 = vector.shape_cast %13 : vector<64xf32> to vector<64x1xf32>
    %15 = tpu.reciprocal %14 {approx = true} : vector<64x1xf32> -> vector<64x1xf32>
    %16 = vector.broadcast %15 : vector<64x1xf32> to vector<64x128xf32>
    %17 = arith.mulf %12, %16 : vector<64x128xf32>
    %18 = arith.truncf %17 : vector<64x128xf32> to vector<64x128xbf16>
    %c0_8 = arith.constant 0 : index
    %c0_9 = arith.constant 0 : index
    %c0_10 = arith.constant 0 : index
    %19 = vector.load %arg8[%c0_8, %c0_9, %c0_10] : memref<1x64x128xbf16, #tpu.memory_space<vmem>>, vector<1x64x128xbf16>
    %20 = vector.shape_cast %19 : vector<1x64x128xbf16> to vector<64x128xbf16>
    %21 = vector.shape_cast %18 : vector<64x128xbf16> to vector<1x64x128xbf16>
    tpu.vector_store %arg8[%c0_8, %c0_9, %c0_10], %21 {strides = array<i32>} : memref<1x64x128xbf16, #tpu.memory_space<vmem>>, vector<1x64x128xbf16>,
    %c0_i32 = arith.constant 0 : i32
    %22 = arith.cmpi eq, %arg1, %c0_i32 : i32
    %23 = arith.extui %22 : i1 to i32
    %c0_i32_11 = arith.constant 0 : i32
    %24 = arith.cmpi ne, %23, %c0_i32_11 : i32
    scf.if %24 {
      %cst_21 = arith.constant 0.000000e+00 : f32
      %33 = vector.broadcast %cst_21 : f32 to vector<32x16xf32>
      %c0_22 = arith.constant 0 : index
      %c0_23 = arith.constant 0 : index
      %34 = vector.load %arg10[%c0_22, %c0_23] : memref<32x16xf32, #tpu.memory_space<vmem>>, vector<32x16xf32>
      tpu.vector_store %arg10[%c0_22, %c0_23], %33 {strides = array<i32>} : memref<32x16xf32, #tpu.memory_space<vmem>>, vector<32x16xf32>,
    } else {
    }
    %c0_12 = arith.constant 0 : index
    %c0_13 = arith.constant 0 : index
    %25 = vector.load %arg10[%c0_12, %c0_13] : memref<32x16xf32, #tpu.memory_space<vmem>>, vector<32x16xf32>
    %c0_14 = arith.constant 0 : index
    %c0_15 = arith.constant 0 : index
    %26 = vector.load %arg3[%c0_14, %c0_15] : memref<64x16xbf16, #tpu.memory_space<vmem>>, vector<64x16xbf16>
    %cst_16 = arith.constant dense<0.000000e+00> : vector<32x16xf32>
    %27 = tpu.matmul %2, %26, %cst_16 {dimension_numbers = #tpu.dot_dimension_numbers<[1], [0], [0], [1], [0, 0, 1, 1], [], []>} : vector<32x64xbf16>, vector<64x16xbf16>, vector<32x16xf32> -> vector<32x16xf32>
    %28 = arith.addf %25, %27 : vector<32x16xf32>
    %c0_17 = arith.constant 0 : index
    %c0_18 = arith.constant 0 : index
    %29 = vector.load %arg10[%c0_17, %c0_18] : memref<32x16xf32, #tpu.memory_space<vmem>>, vector<32x16xf32>
    tpu.vector_store %arg10[%c0_17, %c0_18], %28 {strides = array<i32>} : memref<32x16xf32, #tpu.memory_space<vmem>>, vector<32x16xf32>,
    %c0_i32_19 = arith.constant 0 : i32
    %30 = arith.cmpi eq, %arg1, %c0_i32_19 : i32
    %31 = arith.extui %30 : i1 to i32
    %c0_i32_20 = arith.constant 0 : i32
    %32 = arith.cmpi ne, %31, %c0_i32_20 : i32
    scf.if %32 {
      %c0_21 = arith.constant 0 : index
      %c0_22 = arith.constant 0 : index
      %33 = vector.load %arg10[%c0_21, %c0_22] : memref<32x16xf32, #tpu.memory_space<vmem>>, vector<32x16xf32>
      %34 = arith.truncf %33 : vector<32x16xf32> to vector<32x16xbf16>
      %c0_23 = arith.constant 0 : index
      %c0_24 = arith.constant 0 : index
      %35 = vector.load %arg6[%c0_23, %c0_24] : memref<32x128xbf16, #tpu.memory_space<vmem>>, vector<32x128xbf16>
      %cst_25 = arith.constant dense<0.000000e+00> : vector<16x128xf32>
      %36 = tpu.matmul %34, %35, %cst_25 {dimension_numbers = #tpu.dot_dimension_numbers<[0], [0], [1], [1], [0, 1, 1, 1], [], []>} : vector<32x16xbf16>, vector<32x128xbf16>, vector<16x128xf32> -> vector<16x128xf32>
      %c0_26 = arith.constant 0 : index
      %c0_27 = arith.constant 0 : index
      %37 = vector.load %arg7[%c0_26, %c0_27] : memref<1x128xf32, #tpu.memory_space<vmem>>, vector<1x128xf32>
      %38 = vector.broadcast %37 : vector<1x128xf32> to vector<16x128xf32>
      %39 = arith.addf %36, %38 : vector<16x128xf32>
      %cst_28 = arith.constant dense<0xFF800000> : vector<16xf32>
      %40 = vector.multi_reduction <maximumf>, %39, %cst_28 [1] : vector<16x128xf32> to vector<16xf32>
      %41 = vector.shape_cast %40 : vector<16xf32> to vector<16x1xf32>
      %42 = vector.broadcast %41 : vector<16x1xf32> to vector<16x128xf32>
      %43 = arith.subf %39, %42 : vector<16x128xf32>
      %44 = math.exp %43 : vector<16x128xf32>
      %cst_29 = arith.constant dense<0.000000e+00> : vector<16xf32>
      %45 = vector.multi_reduction <add>, %44, %cst_29 [1] : vector<16x128xf32> to vector<16xf32>
      %46 = vector.shape_cast %45 : vector<16xf32> to vector<16x1xf32>
      %47 = tpu.reciprocal %46 {approx = true} : vector<16x1xf32> -> vector<16x1xf32>
      %48 = vector.broadcast %47 : vector<16x1xf32> to vector<16x128xf32>
      %49 = arith.mulf %44, %48 : vector<16x128xf32>
      %50 = arith.truncf %49 : vector<16x128xf32> to vector<16x128xbf16>
      %c0_30 = arith.constant 0 : index
      %c0_31 = arith.constant 0 : index
      %c0_32 = arith.constant 0 : index
      %51 = vector.load %arg9[%c0_30, %c0_31, %c0_32] : memref<1x16x128xbf16, #tpu.memory_space<vmem>>, vector<1x16x128xbf16>
      %52 = vector.shape_cast %51 : vector<1x16x128xbf16> to vector<16x128xbf16>
      %53 = vector.shape_cast %50 : vector<16x128xbf16> to vector<1x16x128xbf16>
      tpu.vector_store %arg9[%c0_30, %c0_31, %c0_32], %53 {strides = array<i32>} : memref<1x16x128xbf16, #tpu.memory_space<vmem>>, vector<1x16x128xbf16>,
    } else {
    }
    return
  }
  func.func @transform_0(%arg0: i32, %arg1: i32) -> (i32, i32, i32) {
    %c0_i32 = arith.constant 0 : i32
    %c0_i32_0 = arith.constant 0 : i32
    return %arg0, %c0_i32, %arg1 : i32, i32, i32
  }
  func.func @transform_1(%arg0: i32, %arg1: i32) -> (i32, i32) {
    %c0_i32 = arith.constant 0 : i32
    %c0_i32_0 = arith.constant 0 : i32
    return %arg1, %c0_i32 : i32, i32
  }
  func.func @transform_2(%arg0: i32, %arg1: i32) -> (i32, i32) {
    %c0_i32 = arith.constant 0 : i32
    %c0_i32_0 = arith.constant 0 : i32
    %c0_i32_1 = arith.constant 0 : i32
    return %c0_i32, %c0_i32_0 : i32, i32
  }
  func.func @transform_3(%arg0: i32, %arg1: i32) -> (i32, i32) {
    %c0_i32 = arith.constant 0 : i32
    %c0_i32_0 = arith.constant 0 : i32
    %c0_i32_1 = arith.constant 0 : i32
    return %c0_i32, %c0_i32_0 : i32, i32
  }
  func.func @transform_4(%arg0: i32, %arg1: i32) -> (i32, i32) {
    %c0_i32 = arith.constant 0 : i32
    %c0_i32_0 = arith.constant 0 : i32
    %c0_i32_1 = arith.constant 0 : i32
    return %c0_i32, %c0_i32_0 : i32, i32
  }
  func.func @transform_5(%arg0: i32, %arg1: i32) -> (i32, i32) {
    %c0_i32 = arith.constant 0 : i32
    %c0_i32_0 = arith.constant 0 : i32
    %c0_i32_1 = arith.constant 0 : i32
    return %c0_i32, %c0_i32_0 : i32, i32
  }
  func.func @transform_6(%arg0: i32, %arg1: i32) -> (i32, i32, i32) {
    %c0_i32 = arith.constant 0 : i32
    %c0_i32_0 = arith.constant 0 : i32
    return %arg0, %arg1, %c0_i32 : i32, i32, i32
  }
  func.func @transform_7(%arg0: i32, %arg1: i32) -> (i32, i32, i32) {
    %c0_i32 = arith.constant 0 : i32
    %c0_i32_0 = arith.constant 0 : i32
    %c0_i32_1 = arith.constant 0 : i32
    return %arg0, %c0_i32, %c0_i32_0 : i32, i32, i32
  }
}

</mosaic_0001>

<llo_original>
// kernel: tpu_custom_call.1
$region0: #{tpu_custom_call.1}
  #allocation0 [shape = 'u32[]', space=smem, size = 0x4, offset = 0x4, fixed_abs, tag = 'smem constant byte address 0x4 - core index']
  #allocation1 [shape = 'u32[144,128]{1,0:T(1,128)}', space=vmem, size = 0x12000, scoped, tag = 'internal scratch']
  #allocation2 [shape = 'f32[32,16]{1,0:T(8,128)}', space=vmem, size = 0x4000, scoped, tag = 'scratch operand']
  %s0 = inlined_call_operand.hbm [shape: f32[2,32,64], index: 0, kind: input, shape index: {}]
  %s1 = inlined_call_operand.vmem [shape: bf16[64,16], index: 1, kind: input, shape index: {}]
  %s2 = inlined_call_operand.vmem [shape: bf16[32,128], index: 2, kind: input, shape index: {}]
  %s3 = inlined_call_operand.vmem [shape: f32[1,128], index: 3, kind: input, shape index: {}]
  %s4 = inlined_call_operand.vmem [shape: bf16[32,128], index: 4, kind: input, shape index: {}]
  %s5 = inlined_call_operand.vmem [shape: f32[1,128], index: 5, kind: input, shape index: {}]
  %s6 = inlined_call_operand.hbm [shape: bf16[2,64,128], index: 6, kind: output, shape index: {0}]
  %s7 = inlined_call_operand.hbm [shape: bf16[2,16,128], index: 7, kind: output, shape index: {1}]
  %8 = xla_tuple %s6, %s7
  %s9 = sld [smem:[#allocation0]]
  $region77: #{tpu_custom_call.1} parent=0
    _
  %s11 = ssub.s32 1, %s9
  %s12 = scalar_select 0, %s11, %s9
  $region1: #{tpu_custom_call.1} parent=0
    #allocation3 [shape = 'u8[32768]{0}', space=vmem, size = 0x8000, scoped, tag = 'input window, operand 0']
    #allocation4 [shape = 's32[2]{0}', space=sflag, size = 0x8, scoped, tag = 'scoped memory for tpu_custom_call.1']
    #allocation5 [shape = 's32[2]{0}', space=sflag, size = 0x8, scoped, tag = 'scoped memory for tpu_custom_call.1']
    #allocation6 [shape = 'u8[32768]{0}', space=vmem, size = 0x8000, scoped, tag = 'output window, operand 0']
    #allocation7 [shape = 'u8[8192]{0}', space=vmem, size = 0x2000, scoped, tag = 'output window, operand 1']
    #allocation8 [shape = 's32[2]{0}', space=sflag, size = 0x8, scoped, tag = 'scoped memory for tpu_custom_call.1']
    %13 = vsyncpa [#allocation4], 0
    %s14 = scalar_lea.sflag [#allocation4], 1
    %15 = vsyncpa %s14, 0
    %16 = vsyncpa [#allocation5], 0
    %s17 = scalar_lea.sflag [#allocation5], 1
    %18 = vsyncpa %s17, 0
    %19 = vsyncpa [#allocation8], 0
    %s20 = scalar_lea.sflag [#allocation8], 1
    %21 = vsyncpa %s20, 0
    loop: start=0, step=1, limit=4
    $region2: #{tpu_custom_call.1} parent=1 // loop_pre_header
      _
    $region3: #{tpu_custom_call.1} parent=1 // loop_header
      %s23 = sphi 0, %s27
      %p24 = scmp.ge.s32.totalorder %s23, 4
      %s30 = sphi 0, %s42
      %s31 = sphi 0, %s38
      %s32 = sphi 0, %s30
      %s33 = sphi 0, %s31
      %s34 = sphi 0, %s32
      %s35 = sphi 0, %s33
      %s47 = sphi 0, %s49
      %s50 = sphi 0, %s47
      %s51 = sphi 0, %s50
      %s67 = sphi 0, %s51
      %s73 = sphi 0, %s75
      %s76 = sphi 0, %s73
      %s77 = sphi 0, %s76
      %s93 = sphi 0, %s77
      %s97 = sphi 0, %s97
      %s99 = sphi 0, %s97
      %s100 = sphi 0, %s99
      %s114 = sphi 0, %s100
      %s118 = sphi 0, %s118
      %s120 = sphi 0, %s118
      %s121 = sphi 0, %s120
      %s135 = sphi 0, %s121
      %s139 = sphi 0, %s139
      %s141 = sphi 0, %s139
      %s142 = sphi 0, %s141
      %s156 = sphi 0, %s142
      %s160 = sphi 0, %s160
      %s162 = sphi 0, %s160
      %s163 = sphi 0, %s162
      %s177 = sphi 0, %s163
      %s185 = sphi 0, %s187
      %s188 = sphi 0, %s185
      %s189 = sphi 0, %s188
      %s205 = sphi 0, %s189
      %s211 = sphi 0, %s213
      %s214 = sphi 0, %s211
      %s215 = sphi 0, %s214
      %s231 = sphi 0, %s215
    $region4: #{tpu_custom_call.1} parent=1 // loop_header_branch
      %26 = sbr.rel (%p24) target = $region8
    $region5: #{tpu_custom_call.1} parent=1 // loop_body
      %s28 = ssub.s32 %s23, 1
      %s29 = ssub.s32 %s23, 2
      %s36 = sadd.s32 1, %s31
      %p37 = scmp.ge.s32.totalorder %s36, 1
      %s38 = scalar_select %p37, 0, %s36
      %s39 = sadd.s32 1, %s30
      %s40 = scalar_select %p37, %s39, %s30
      %p41 = scmp.ge.s32.totalorder %s40, 2
      %s42 = scalar_select %p41, 0, %s40
      %s43 = ssub.s32 %s30, %s42
      %s44 = ssub.s32 %s31, %s38
      %s45 = sor.u32 %s43, %s44
      %p46 = scmp.eq.s32.totalorder %s45, 0
      %s48 = sadd.s32 %s47, 1
      %s49 = scalar_select %p46, %s47, %s48
      %p52 = pneg %p46
      %p53 = scmp.eq.s32.totalorder %s23, 1
      %p54 = por %p52, %p53
      %p55 = scmp.ne.s32.totalorder %s47, %s50
      %p56 = scmp.eq.s32.totalorder %s23, 0
      %p57 = por %p55, %p56
      %p58 = scmp.ne.s32.totalorder %s47, %s50
      %p59 = scmp.eq.s32.totalorder %s28, 1
      %p60 = por %p58, %p59
      %p61 = scmp.ne.s32.totalorder %s50, %s51
      %p62 = scmp.eq.s32.totalorder %s28, 0
      %p63 = por %p61, %p62
      %p64 = scmp.ne.s32.totalorder %s50, %s51
      %p65 = scmp.eq.s32.totalorder %s29, 1
      %p66 = por %p64, %p65
      %p68 = scmp.ne.s32.totalorder %s51, %s67
      %p69 = scmp.eq.s32.totalorder %s29, 0
      %p70 = por %p68, %p69
      %s71 = ssub.s32 %s31, %s38
      %p72 = scmp.eq.s32.totalorder %s71, 0
      %s74 = sadd.s32 %s73, 1
      %s75 = scalar_select %p72, %s73, %s74
      %p78 = pneg %p72
      %p79 = scmp.eq.s32.totalorder %s23, 1
      %p80 = por %p78, %p79
      %p81 = scmp.ne.s32.totalorder %s73, %s76
      %p82 = scmp.eq.s32.totalorder %s23, 0
      %p83 = por %p81, %p82
      %p84 = scmp.ne.s32.totalorder %s73, %s76
      %p85 = scmp.eq.s32.totalorder %s28, 1
      %p86 = por %p84, %p85
      %p87 = scmp.ne.s32.totalorder %s76, %s77
      %p88 = scmp.eq.s32.totalorder %s28, 0
      %p89 = por %p87, %p88
      %p90 = scmp.ne.s32.totalorder %s76, %s77
      %p91 = scmp.eq.s32.totalorder %s29, 1
      %p92 = por %p90, %p91
      %p94 = scmp.ne.s32.totalorder %s77, %s93
      %p95 = scmp.eq.s32.totalorder %s29, 0
      %p96 = por %p94, %p95
      %s98 = sadd.s32 %s97, 1
      %p101 = scmp.eq.s32.totalorder %s23, 1
      %p102 = scmp.ne.s32.totalorder %s97, %s99
      %p103 = scmp.eq.s32.totalorder %s23, 0
      %p104 = por %p102, %p103
      %p105 = scmp.ne.s32.totalorder %s97, %s99
      %p106 = scmp.eq.s32.totalorder %s28, 1
      %p107 = por %p105, %p106
      %p108 = scmp.ne.s32.totalorder %s99, %s100
      %p109 = scmp.eq.s32.totalorder %s28, 0
      %p110 = por %p108, %p109
      %p111 = scmp.ne.s32.totalorder %s99, %s100
      %p112 = scmp.eq.s32.totalorder %s29, 1
      %p113 = por %p111, %p112
      %p115 = scmp.ne.s32.totalorder %s100, %s114
      %p116 = scmp.eq.s32.totalorder %s29, 0
      %p117 = por %p115, %p116
      %s119 = sadd.s32 %s118, 1
      %p122 = scmp.eq.s32.totalorder %s23, 1
      %p123 = scmp.ne.s32.totalorder %s118, %s120
      %p124 = scmp.eq.s32.totalorder %s23, 0
      %p125 = por %p123, %p124
      %p126 = scmp.ne.s32.totalorder %s118, %s120
      %p127 = scmp.eq.s32.totalorder %s28, 1
      %p128 = por %p126, %p127
      %p129 = scmp.ne.s32.totalorder %s120, %s121
      %p130 = scmp.eq.s32.totalorder %s28, 0
      %p131 = por %p129, %p130
      %p132 = scmp.ne.s32.totalorder %s120, %s121
      %p133 = scmp.eq.s32.totalorder %s29, 1
      %p134 = por %p132, %p133
      %p136 = scmp.ne.s32.totalorder %s121, %s135
      %p137 = scmp.eq.s32.totalorder %s29, 0
      %p138 = por %p136, %p137
      %s140 = sadd.s32 %s139, 1
      %p143 = scmp.eq.s32.totalorder %s23, 1
      %p144 = scmp.ne.s32.totalorder %s139, %s141
      %p145 = scmp.eq.s32.totalorder %s23, 0
      %p146 = por %p144, %p145
      %p147 = scmp.ne.s32.totalorder %s139, %s141
      %p148 = scmp.eq.s32.totalorder %s28, 1
      %p149 = por %p147, %p148
      %p150 = scmp.ne.s32.totalorder %s141, %s142
      %p151 = scmp.eq.s32.totalorder %s28, 0
      %p152 = por %p150, %p151
      %p153 = scmp.ne.s32.totalorder %s141, %s142
      %p154 = scmp.eq.s32.totalorder %s29, 1
      %p155 = por %p153, %p154
      %p157 = scmp.ne.s32.totalorder %s142, %s156
      %p158 = scmp.eq.s32.totalorder %s29, 0
      %p159 = por %p157, %p158
      %s161 = sadd.s32 %s160, 1
      %p164 = scmp.eq.s32.totalorder %s23, 1
      %p165 = scmp.ne.s32.totalorder %s160, %s162
      %p166 = scmp.eq.s32.totalorder %s23, 0
      %p167 = por %p165, %p166
      %p168 = scmp.ne.s32.totalorder %s160, %s162
      %p169 = scmp.eq.s32.totalorder %s28, 1
      %p170 = por %p168, %p169
      %p171 = scmp.ne.s32.totalorder %s162, %s163
      %p172 = scmp.eq.s32.totalorder %s28, 0
      %p173 = por %p171, %p172
      %p174 = scmp.ne.s32.totalorder %s162, %s163
      %p175 = scmp.eq.s32.totalorder %s29, 1
      %p176 = por %p174, %p175
      %p178 = scmp.ne.s32.totalorder %s163, %s177
      %p179 = scmp.eq.s32.totalorder %s29, 0
      %p180 = por %p178, %p179
      %s181 = ssub.s32 %s30, %s42
      %s182 = ssub.s32 %s31, %s38
      %s183 = sor.u32 %s181, %s182
      %p184 = scmp.eq.s32.totalorder %s183, 0
      %s186 = sadd.s32 %s185, 1
      %s187 = scalar_select %p184, %s185, %s186
      %p190 = pneg %p184
      %p191 = scmp.eq.s32.totalorder %s23, 1
      %p192 = por %p190, %p191
      %p193 = scmp.ne.s32.totalorder %s185, %s188
      %p194 = scmp.eq.s32.totalorder %s23, 0
      %p195 = por %p193, %p194
      %p196 = scmp.ne.s32.totalorder %s185, %s188
      %p197 = scmp.eq.s32.totalorder %s28, 1
      %p198 = por %p196, %p197
      %p199 = scmp.ne.s32.totalorder %s188, %s189
      %p200 = scmp.eq.s32.totalorder %s28, 0
      %p201 = por %p199, %p200
      %p202 = scmp.ne.s32.totalorder %s188, %s189
      %p203 = scmp.eq.s32.totalorder %s29, 1
      %p204 = por %p202, %p203
      %p206 = scmp.ne.s32.totalorder %s189, %s205
      %p207 = scmp.eq.s32.totalorder %s29, 0
      %p208 = por %p206, %p207
      %s209 = ssub.s32 %s30, %s42
      %p210 = scmp.eq.s32.totalorder %s209, 0
      %s212 = sadd.s32 %s211, 1
      %s213 = scalar_select %p210, %s211, %s212
      %p216 = pneg %p210
      %p217 = scmp.eq.s32.totalorder %s23, 1
      %p218 = por %p216, %p217
      %p219 = scmp.ne.s32.totalorder %s211, %s214
      %p220 = scmp.eq.s32.totalorder %s23, 0
      %p221 = por %p219, %p220
      %p222 = scmp.ne.s32.totalorder %s211, %s214
      %p223 = scmp.eq.s32.totalorder %s28, 1
      %p224 = por %p222, %p223
      %p225 = scmp.ne.s32.totalorder %s214, %s215
      %p226 = scmp.eq.s32.totalorder %s28, 0
      %p227 = por %p225, %p226
      %p228 = scmp.ne.s32.totalorder %s214, %s215
      %p229 = scmp.eq.s32.totalorder %s29, 1
      %p230 = por %p228, %p229
      %p232 = scmp.ne.s32.totalorder %s215, %s231
      %p233 = scmp.eq.s32.totalorder %s29, 0
      %p234 = por %p232, %p233
      %p235 = scmp.le.s32.totalorder 1, %s23
      %p236 = scmp.lt.s32.totalorder %s23, 3
      %p237 = pnand %p235, %p236
      %p238 = pneg %p237
      // Predicated region
      $region9: #{tpu_custom_call.1} parent=5 // pred_check
        _
      $region10: #{tpu_custom_call.1} parent=5 // pred_check_branch
        %240 = sbr.rel (%p237) target = $region12
      $region11: #{tpu_custom_call.1} parent=5 // pred_region
        %s241 = ssub.s32 %s23, 1
        // Predicated region
        $region13: #{tpu_custom_call.1} parent=11 // pred_check
          %p242 = pneg %p89
        $region14: #{tpu_custom_call.1} parent=11 // pred_check_branch
          %244 = sbr.rel (%p242) target = $region16
        $region15: #{tpu_custom_call.1} parent=11 // pred_region
          %s245 = smul.u32 8, %s33
          %p246 = scmp.lt.s32.totalorder %s245, 7
          %s247 = scalar_select %p246, %s245, 7
          %s248 = smul.addr %s247, 4
          %s249 = scalar_lea.vmem %s1, %s248
          %s250 = smul.u32 8, %s33
        $region16: #{tpu_custom_call.1} parent=11 // pred_fallthru
          _
        // Predicated region
        $region17: #{tpu_custom_call.1} parent=11 // pred_check
          %p251 = pneg %p110
        $region18: #{tpu_custom_call.1} parent=11 // pred_check_branch
          %253 = sbr.rel (%p251) target = $region20
        $region19: #{tpu_custom_call.1} parent=11 // pred_region
          _
        $region20: #{tpu_custom_call.1} parent=11 // pred_fallthru
          _
        // Predicated region
        $region21: #{tpu_custom_call.1} parent=11 // pred_check
          %p254 = pneg %p131
        $region22: #{tpu_custom_call.1} parent=11 // pred_check_branch
          %256 = sbr.rel (%p254) target = $region24
        $region23: #{tpu_custom_call.1} parent=11 // pred_region
          _
        $region24: #{tpu_custom_call.1} parent=11 // pred_fallthru
          _
        // Predicated region
        $region25: #{tpu_custom_call.1} parent=11 // pred_check
          %p257 = pneg %p152
        $region26: #{tpu_custom_call.1} parent=11 // pred_check_branch
          %259 = sbr.rel (%p257) target = $region28
        $region27: #{tpu_custom_call.1} parent=11 // pred_region
          _
        $region28: #{tpu_custom_call.1} parent=11 // pred_fallthru
          _
        // Predicated region
        $region29: #{tpu_custom_call.1} parent=11 // pred_check
          %p260 = pneg %p173
        $region30: #{tpu_custom_call.1} parent=11 // pred_check_branch
          %262 = sbr.rel (%p260) target = $region32
        $region31: #{tpu_custom_call.1} parent=11 // pred_region
          _
        $region32: #{tpu_custom_call.1} parent=11 // pred_fallthru
          _
      $region12: #{tpu_custom_call.1} parent=5 // pred_fallthru
        _
      %p263 = scmp.lt.s32.totalorder %s23, 2
      // Predicated region
      $region33: #{tpu_custom_call.1} parent=5 // pred_check
        %p264 = pneg %p263
      $region34: #{tpu_custom_call.1} parent=5 // pred_check_branch
        %266 = sbr.rel (%p264) target = $region36
      $region35: #{tpu_custom_call.1} parent=5 // pred_region
        // Predicated region
        $region37: #{tpu_custom_call.1} parent=35 // pred_check
          %p267 = pneg %p57
        $region38: #{tpu_custom_call.1} parent=35 // pred_check_branch
          %269 = sbr.rel (%p267) target = $region40
        $region39: #{tpu_custom_call.1} parent=35 // pred_region
          %s270 = sand.u32 %s47, 1
          %s271 = scalar_lea.sflag [#allocation4], %s270
          %s272 = sand.u32 %s47, 1
          %s273 = smul.addr %s272, 32
          %s274 = scalar_lea.vmem [#allocation3], %s273
          %s276 = ssub.s32 512, 512
          %277 = vsyncadd %s271, %s276
          %s278 = smul.addr %s30, 4
          %s279 = sadd.s32 %s31, %s278
          %s280 = smul.addr %s279, 128
          %s281 = scalar_lea.hbm %s0, %s280
          %s282 = sshll.u32 %s274, 4
          %s283 = int_to_ptr.vmem [resolvable:$true] %s282
          %288 = dma.hbm_to_vmem [thread:$0]  %s281, 512, %s283, %s271, 128, 128, 8
        $region40: #{tpu_custom_call.1} parent=35 // pred_fallthru
          _
      $region36: #{tpu_custom_call.1} parent=5 // pred_fallthru
        _
      %p289 = scmp.le.s32.totalorder 1, %s23
      %p290 = scmp.lt.s32.totalorder %s23, 3
      %p291 = pnand %p289, %p290
      %p292 = pneg %p291
      // Predicated region
      $region41: #{tpu_custom_call.1} parent=5 // pred_check
        _
      $region42: #{tpu_custom_call.1} parent=5 // pred_check_branch
        %294 = sbr.rel (%p291) target = $region44
      $region43: #{tpu_custom_call.1} parent=5 // pred_region
        %s295 = ssub.s32 %s23, 1
        %s296 = sand.u32 %s50, 1
        %s297 = scalar_lea.sflag [#allocation4], %s296
        %s298 = sand.u32 %s50, 1
        %s299 = smul.addr %s298, 32
        %s300 = scalar_lea.vmem [#allocation3], %s299
        // Predicated region
        $region45: #{tpu_custom_call.1} parent=43 // pred_check
          %p301 = pneg %p63
        $region46: #{tpu_custom_call.1} parent=43 // pred_check_branch
          %303 = sbr.rel (%p301) target = $region48
        $region47: #{tpu_custom_call.1} parent=43 // pred_region
          %304 = dma.done %s297, 512
        $region48: #{tpu_custom_call.1} parent=43 // pred_fallthru
          _
        %s305 = sand.u32 %s50, 1
        %s306 = scalar_lea.sflag [#allocation4], %s305
        %s307 = sand.u32 %s50, 1
        %s308 = smul.addr %s307, 32
        %s309 = scalar_lea.vmem [#allocation3], %s308
        %p310 = pneg %p63
        %p311 = pneg %p60
        %s312 = smul.u32 8, %s33
        %p313 = scmp.lt.s32.totalorder %s312, 7
        %s314 = scalar_select %p313, %s312, 7
        %s315 = smul.addr %s314, 4
        %s316 = scalar_lea.vmem %s1, %s315
        %p317 = pneg %p89
        %p318 = pneg %p86
        %p319 = pneg %p110
        %p320 = pneg %p107
        %p321 = pneg %p131
        %p322 = pneg %p128
        %p323 = pneg %p152
        %p324 = pneg %p149
        %p325 = pneg %p173
        %p326 = pneg %p170
        %p327 = pneg %p201
        %p328 = pneg %p198
        %s329 = sand.u32 %s188, 1
        %s330 = scalar_lea.sflag [#allocation5], %s329
        %s331 = sand.u32 %s188, 1
        %s332 = smul.addr %s331, 32
        %s333 = scalar_lea.vmem [#allocation6], %s332
        %p334 = pneg %p227
        %p335 = pneg %p224
        %s336 = sand.u32 %s214, 1
        %s337 = scalar_lea.sflag [#allocation8], %s336
        %s338 = sand.u32 %s214, 1
        %s339 = smul.addr %s338, 8
        %s340 = scalar_lea.vmem [#allocation7], %s339
        %s341 = smul.u32 8, %s33
        %p342 = scmp.lt.s32.totalorder %s341, 7
        %s343 = scalar_select %p342, %s341, 7
        %s344 = smul.addr %s343, 4
        %s345 = scalar_lea.vmem %s1, %s344
        %s346 = smul.u32 8, %s33
        %s347 = smul.u32 8, %s33
        %v349 = vld [vmem:[%s300] sm:$0xff]
        %v350 = vld [vmem:[%s300 + $0x8] sm:$0xff]
        %v351 = vld [vmem:[%s300 + $0x10] sm:$0xff]
        %v352 = vld [vmem:[%s300 + $0x18] sm:$0xff]
        %v353 = vpack.c.bf16 %v350, %v349
        %v354 = vpack.c.bf16 %v352, %v351
        %v355 = vld [vmem:[%s2] sm:$0xf]
        %v356 = vld [vmem:[%s2 + $0x4] sm:$0xf]
        %v357 = vld [vmem:[%s2 + $0x8] sm:$0xf]
        %v358 = vld [vmem:[%s2 + $0xc] sm:$0xf]
        %v359 = vld [vmem:[%s3] sm:$0x1]
        %v361 = vlaneseq
        %v362 = vshrl.u32 %v361, 7
        %v363 = vsub.s32 0, %v362
        %v364 = vrot.slane %v359, %v363
        %366 = vxpose.xlu0.c.b16.start [1/8] %v353, 128
        %367 = vxpose.xlu0.c.b16.cont [2/8] %v354, 128
        %368 = vxpose.xlu0.c.b16.cont [3/8] 0, 128
        %369 = vxpose.xlu0.c.b16.cont [4/8] 0, 128
        %370 = vxpose.xlu0.c.b16.cont [5/8] 0, 128
        %371 = vxpose.xlu0.c.b16.cont [6/8] 0, 128
        %372 = vxpose.xlu0.c.b16.cont [7/8] 0, 128
        %373 = vxpose.xlu0.c.b16.end [8/8] 0, 128
        %v374 = vpop.trf.xlu0
        %v375 = vpop.trf.xlu0
        %v376 = vpop.trf.xlu0
        %v377 = vpop.trf.xlu0
        %v378 = vpop.trf.xlu0
        %v379 = vpop.trf.xlu0
        %v380 = vpop.trf.xlu0
        %v381 = vpop.trf.xlu0
        %v386 = vunpack.c.l.b16 %v355
        %v387 = vunpack.c.l.b16 %v356
        %v388 = vunpack.c.l.b16 %v357
        %v389 = vunpack.c.l.b16 %v358
        %v390 = vpack.c.b16 %v387, %v386
        %v391 = vpack.c.b16 %v389, %v388
        %vm394 = vcmask 261120
        %v396 = vsel %vm394, %v374, 0
        %v399 = vsel %vm394, %v375, 0
        %v402 = vsel %vm394, %v376, 0
        %v405 = vsel %vm394, %v377, 0
        %407 = vmatprep.subr.bf16.mxu0 0
        %408 = vmatpush1.bf16.msra.mxu0 0
        %409 = vmatprep.subr.bf16.mxu0 0
        %410 = vmatpush1.bf16.msra.mxu0 0
        %411 = vmatprep.subr.bf16.mxu0 0
        %412 = vmatpush1.bf16.msra.mxu0 0
        %413 = vmatprep.subr.bf16.mxu0 0
        %414 = vmatpush1.bf16.msra.mxu0 0
        %415 = vmatprep.subr.bf16.mxu0 0
        %416 = vmatpush1.bf16.msra.mxu0 0
        %417 = vmatprep.subr.bf16.mxu0 0
        %418 = vmatpush1.bf16.msra.mxu0 0
        %419 = vmatprep.subr.bf16.mxu0 0
        %420 = vmatpush1.bf16.msra.mxu0 %v391
        %421 = vmatprep.subr.bf16.mxu0 0
        %422 = vmatpush1.bf16.msra.mxu0 %v390
        %423 = vmatprep.subr.bf16.mxu0 0
        %424 = vmatpush2.bf16.msra.mxu0 0
        %425 = vmatprep.subr.bf16.mxu0 0
        %426 = vmatpush2.bf16.msra.mxu0 0
        %427 = vmatprep.subr.bf16.mxu0 0
        %428 = vmatpush2.bf16.msra.mxu0 0
        %429 = vmatprep.subr.bf16.mxu0 0
        %430 = vmatpush2.bf16.msra.mxu0 0
        %431 = vmatprep.subr.bf16.mxu0 0
        %432 = vmatpush2.bf16.msra.mxu0 0
        %433 = vmatprep.subr.bf16.mxu0 0
        %434 = vmatpush2.bf16.msra.mxu0 0
        %435 = vmatprep.subr.bf16.mxu0 0
        %436 = vmatpush2.bf16.msra.mxu0 0
        %437 = vmatprep.subr.bf16.mxu0 0
        %438 = vmatpush2.bf16.msra.mxu0 0
        %439 = vmatprep.mubr.bf16.mxu0 0
        %440 = vmatmul.mubr.bf16.gmra.mxu0 %v396
        %v441 = vpop.f32.mrf.mxu0
        %v442 = vadd.f32 %v364, %v441
        %v443 = vpop.f32.mrf.mxu0
        %v444 = vpop.f32.mrf.mxu0
        %v445 = vadd.f32 %v364, %v444
        %v446 = vpop.f32.mrf.mxu0
        %447 = vmatprep.mubr.bf16.mxu0 0
        %448 = vmatmul.mubr.bf16.gmra.mxu0 %v399
        %v449 = vpop.f32.mrf.mxu0
        %v450 = vadd.f32 %v364, %v449
        %v451 = vpop.f32.mrf.mxu0
        %v452 = vpop.f32.mrf.mxu0
        %v453 = vadd.f32 %v364, %v452
        %v454 = vpop.f32.mrf.mxu0
        %455 = vmatprep.mubr.bf16.mxu0 0
        %456 = vmatmul.mubr.bf16.gmra.mxu0 %v402
        %v457 = vpop.f32.mrf.mxu0
        %v458 = vadd.f32 %v364, %v457
        %v459 = vpop.f32.mrf.mxu0
        %v460 = vpop.f32.mrf.mxu0
        %v461 = vadd.f32 %v364, %v460
        %v462 = vpop.f32.mrf.mxu0
        %463 = vmatprep.mubr.bf16.mxu0 0
        %464 = vmatmul.mubr.bf16.gmra.mxu0 %v405
        %v465 = vpop.f32.mrf.mxu0
        %v466 = vadd.f32 %v364, %v465
        %v467 = vpop.f32.mrf.mxu0
        %v468 = vpop.f32.mrf.mxu0
        %v469 = vadd.f32 %v364, %v468
        %v470 = vpop.f32.mrf.mxu0
        %471 = vdwg.mxu0
        %472 = vmax.xlane.f32.xlu0 %v442
        %v473 = vpop.xlane.xlu0 %472
        %474 = vmax.xlane.f32.xlu0 %v445
        %v475 = vpop.xlane.xlu0 %474
        %476 = vmax.xlane.f32.xlu0 %v450
        %v477 = vpop.xlane.xlu0 %476
        %478 = vmax.xlane.f32.xlu0 %v453
        %v479 = vpop.xlane.xlu0 %478
        %480 = vmax.xlane.f32.xlu0 %v458
        %v481 = vpop.xlane.xlu0 %480
        %482 = vmax.xlane.f32.xlu0 %v461
        %v483 = vpop.xlane.xlu0 %482
        %484 = vmax.xlane.f32.xlu0 %v466
        %v485 = vpop.xlane.xlu0 %484
        %486 = vmax.xlane.f32.xlu0 %v469
        %v487 = vpop.xlane.xlu0 %486
        %v488 = vsub.f32 %v442, %v473
        %v489 = vsub.f32 %v445, %v475
        %v490 = vsub.f32 %v450, %v477
        %v491 = vsub.f32 %v453, %v479
        %v492 = vsub.f32 %v458, %v481
        %v493 = vsub.f32 %v461, %v483
        %v494 = vsub.f32 %v466, %v485
        %v495 = vsub.f32 %v469, %v487
        %v496 = vmul.f32 %v488, 1.442695
        %v497 = vpow.pop %v496
        %v498 = vmul.f32 %v489, 1.442695
        %v499 = vpow.pop %v498
        %v500 = vmul.f32 %v490, 1.442695
        %v501 = vpow.pop %v500
        %v502 = vmul.f32 %v491, 1.442695
        %v503 = vpow.pop %v502
        %v504 = vmul.f32 %v492, 1.442695
        %v505 = vpow.pop %v504
        %v506 = vmul.f32 %v493, 1.442695
        %v507 = vpow.pop %v506
        %v508 = vmul.f32 %v494, 1.442695
        %v509 = vpow.pop %v508
        %v510 = vmul.f32 %v495, 1.442695
        %v511 = vpow.pop %v510
        %512 = vadd.xlane.f32.xlu0 %v497
        %v513 = vpop.xlane.xlu0 %512
        %514 = vadd.xlane.f32.xlu0 %v499
        %v515 = vpop.xlane.xlu0 %514
        %516 = vadd.xlane.f32.xlu0 %v501
        %v517 = vpop.xlane.xlu0 %516
        %518 = vadd.xlane.f32.xlu0 %v503
        %v519 = vpop.xlane.xlu0 %518
        %520 = vadd.xlane.f32.xlu0 %v505
        %v521 = vpop.xlane.xlu0 %520
        %522 = vadd.xlane.f32.xlu0 %v507
        %v523 = vpop.xlane.xlu0 %522
        %524 = vadd.xlane.f32.xlu0 %v509
        %v525 = vpop.xlane.xlu0 %524
        %526 = vadd.xlane.f32.xlu0 %v511
        %v527 = vpop.xlane.xlu0 %526
        %v528 = vrcp.pop %v513
        %v529 = vrcp.pop %v515
        %v530 = vrcp.pop %v517
        %v531 = vrcp.pop %v519
        %v532 = vrcp.pop %v521
        %v533 = vrcp.pop %v523
        %v534 = vrcp.pop %v525
        %v535 = vrcp.pop %v527
        %v536 = vmul.f32 %v497, %v528
        %v537 = vmul.f32 %v499, %v529
        %v538 = vmul.f32 %v501, %v530
        %v539 = vmul.f32 %v503, %v531
        %v540 = vmul.f32 %v505, %v532
        %v541 = vmul.f32 %v507, %v533
        %v542 = vmul.f32 %v509, %v534
        %v543 = vmul.f32 %v511, %v535
        %v544 = vpack.c.bf16 %v537, %v536
        %v545 = vpack.c.bf16 %v539, %v538
        %v546 = vpack.c.bf16 %v541, %v540
        %v547 = vpack.c.bf16 %v543, %v542
        %v552 = vunpack.c.l.b16 %v544
        %v553 = vunpack.c.h.b16 %v544
        %v554 = vunpack.c.l.b16 %v545
        %v555 = vunpack.c.h.b16 %v545
        %v556 = vunpack.c.l.b16 %v546
        %v557 = vunpack.c.h.b16 %v546
        %v558 = vunpack.c.l.b16 %v547
        %v559 = vunpack.c.h.b16 %v547
        %v560 = vpack.c.b16 %v552, %v552
        %v561 = vpack.c.b16 %v553, %v553
        %v562 = vpack.c.b16 %v554, %v554
        %v563 = vpack.c.b16 %v555, %v555
        %v564 = vpack.c.b16 %v556, %v556
        %v565 = vpack.c.b16 %v557, %v557
        %v566 = vpack.c.b16 %v558, %v558
        %v567 = vpack.c.b16 %v559, %v559
        %576 = vst [vmem:[%s333] sm:$0xf] %v560
        %577 = vst [vmem:[%s333 + $0x4] sm:$0xf] %v561
        %578 = vst [vmem:[%s333 + $0x8] sm:$0xf] %v562
        %579 = vst [vmem:[%s333 + $0xc] sm:$0xf] %v563
        %580 = vst [vmem:[%s333 + $0x10] sm:$0xf] %v564
        %581 = vst [vmem:[%s333 + $0x14] sm:$0xf] %v565
        %582 = vst [vmem:[%s333 + $0x18] sm:$0xf] %v566
        %583 = vst [vmem:[%s333 + $0x1c] sm:$0xf] %v567
        %p584 = scmp.eq.s32.totalorder %s33, 0
        // Predicated region
        $region49: #{tpu_custom_call.1} parent=43 // pred_check
          %p585 = pneg %p584
        $region50: #{tpu_custom_call.1} parent=43 // pred_check_branch
          %587 = sbr.rel (%p585) target = $region52
        $region51: #{tpu_custom_call.1} parent=43 // pred_region
          %vm588 = vcmask 130048
          %589 = vst.msk [vmem:[#allocation2] sm:$0xff] %vm588, 0.0
          %590 = vst.msk [vmem:[#allocation2 + $0x8] sm:$0xff] %vm588, 0.0
          %591 = vst.msk [vmem:[#allocation2 + $0x10] sm:$0xff] %vm588, 0.0
          %592 = vst.msk [vmem:[#allocation2 + $0x18] sm:$0xff] %vm588, 0.0
        $region52: #{tpu_custom_call.1} parent=43 // pred_fallthru
          _
        %v593 = vld [vmem:[#allocation2] sm:$0xff]
        %v594 = vld [vmem:[#allocation2 + $0x8] sm:$0xff]
        %v595 = vld [vmem:[#allocation2 + $0x10] sm:$0xff]
        %v596 = vld [vmem:[#allocation2 + $0x18] sm:$0xff]
        %v597 = vld [vmem:[%s345] sm:$0xf]
        %v598 = vld [vmem:[%s345 + $0x4] sm:$0xf]
        %v599 = vld [vmem:[%s345 + $0x8] sm:$0xf]
        %v600 = vld [vmem:[%s345 + $0xc] sm:$0xf]
        %v601 = vld [vmem:[%s345 + $0x10] sm:$0xf]
        %v602 = vld [vmem:[%s345 + $0x14] sm:$0xf]
        %v603 = vld [vmem:[%s345 + $0x18] sm:$0xf]
        %v604 = vld [vmem:[%s345 + $0x1c] sm:$0xf]
        %v613 = vunpack.c.l.b16 %v597
        %v614 = vunpack.c.l.b16 %v598
        %v615 = vunpack.c.l.b16 %v599
        %v616 = vunpack.c.l.b16 %v600
        %v617 = vunpack.c.l.b16 %v601
        %v618 = vunpack.c.l.b16 %v602
        %v619 = vunpack.c.l.b16 %v603
        %v620 = vunpack.c.l.b16 %v604
        %v621 = vpack.c.b16 %v614, %v613
        %v622 = vpack.c.b16 %v616, %v615
        %v623 = vpack.c.b16 %v618, %v617
        %v624 = vpack.c.b16 %v620, %v619
        %vm629 = vcmask 523264
        %v631 = vsel %vm629, %v353, 0
        %v634 = vsel %vm629, %v354, 0
        %636 = vmatprep.subr.bf16.mxu0 0
        %637 = vmatpush1.bf16.msra.mxu0 0
        %638 = vmatprep.subr.bf16.mxu0 0
        %639 = vmatpush1.bf16.msra.mxu0 0
        %640 = vmatprep.subr.bf16.mxu0 0
        %641 = vmatpush1.bf16.msra.mxu0 0
        %642 = vmatprep.subr.bf16.mxu0 0
        %643 = vmatpush1.bf16.msra.mxu0 0
        %644 = vmatprep.subr.bf16.mxu0 0
        %645 = vmatpush1.bf16.msra.mxu0 %v624
        %646 = vmatprep.subr.bf16.mxu0 0
        %647 = vmatpush1.bf16.msra.mxu0 %v623
        %648 = vmatprep.subr.bf16.mxu0 0
        %649 = vmatpush1.bf16.msra.mxu0 %v622
        %650 = vmatprep.subr.bf16.mxu0 0
        %651 = vmatpush1.bf16.msra.mxu0 %v621
        %652 = vmatprep.subr.bf16.mxu0 0
        %653 = vmatpush2.bf16.msra.mxu0 0
        %654 = vmatprep.subr.bf16.mxu0 0
        %655 = vmatpush2.bf16.msra.mxu0 0
        %656 = vmatprep.subr.bf16.mxu0 0
        %657 = vmatpush2.bf16.msra.mxu0 0
        %658 = vmatprep.subr.bf16.mxu0 0
        %659 = vmatpush2.bf16.msra.mxu0 0
        %660 = vmatprep.subr.bf16.mxu0 0
        %661 = vmatpush2.bf16.msra.mxu0 0
        %662 = vmatprep.subr.bf16.mxu0 0
        %663 = vmatpush2.bf16.msra.mxu0 0
        %664 = vmatprep.subr.bf16.mxu0 0
        %665 = vmatpush2.bf16.msra.mxu0 0
        %666 = vmatprep.subr.bf16.mxu0 0
        %667 = vmatpush2.bf16.msra.mxu0 0
        %668 = vmatprep.mubr.bf16.mxu0 0
        %669 = vmatmul.mubr.bf16.gmra.mxu0 %v631
        %v670 = vpop.f32.mrf.mxu0
        %v671 = vadd.f32 0.0, %v670
        %v672 = vpop.f32.mrf.mxu0
        %v673 = vpop.f32.mrf.mxu0
        %v674 = vadd.f32 0.0, %v673
        %v675 = vpop.f32.mrf.mxu0
        %676 = vmatprep.mubr.bf16.mxu0 0
        %677 = vmatmul.mubr.bf16.gmra.mxu0 %v634
        %v678 = vpop.f32.mrf.mxu0
        %v679 = vadd.f32 0.0, %v678
        %v680 = vpop.f32.mrf.mxu0
        %v681 = vpop.f32.mrf.mxu0
        %v682 = vadd.f32 0.0, %v681
        %v683 = vpop.f32.mrf.mxu0
        %684 = vdwg.mxu0
        %v685 = vadd.f32 %v593, %v671
        %v686 = vadd.f32 %v594, %v674
        %v687 = vadd.f32 %v595, %v679
        %v688 = vadd.f32 %v596, %v682
        %vm689 = vcmask 130048
        %690 = vst.msk [vmem:[#allocation2] sm:$0xff] %vm689, %v685
        %691 = vst.msk [vmem:[#allocation2 + $0x8] sm:$0xff] %vm689, %v686
        %692 = vst.msk [vmem:[#allocation2 + $0x10] sm:$0xff] %vm689, %v687
        %693 = vst.msk [vmem:[#allocation2 + $0x18] sm:$0xff] %vm689, %v688
        // Predicated region
        $region53: #{tpu_custom_call.1} parent=43 // pred_check
          %p694 = pneg %p584
        $region54: #{tpu_custom_call.1} parent=43 // pred_check_branch
          %696 = sbr.rel (%p694) target = $region56
        $region55: #{tpu_custom_call.1} parent=43 // pred_region
          %v697 = vld [vmem:[#allocation2] sm:$0xff]
          %v698 = vld [vmem:[#allocation2 + $0x8] sm:$0xff]
          %v699 = vld [vmem:[#allocation2 + $0x10] sm:$0xff]
          %v700 = vld [vmem:[#allocation2 + $0x18] sm:$0xff]
          %v701 = vpack.c.bf16 %v698, %v697
          %v702 = vpack.c.bf16 %v700, %v699
          %v703 = vld [vmem:[%s4] sm:$0xf]
          %v704 = vld [vmem:[%s4 + $0x4] sm:$0xf]
          %v705 = vld [vmem:[%s4 + $0x8] sm:$0xf]
          %v706 = vld [vmem:[%s4 + $0xc] sm:$0xf]
          %v707 = vld [vmem:[%s5] sm:$0x1]
          %v709 = vlaneseq
          %v710 = vshrl.u32 %v709, 7
          %v711 = vsub.s32 0, %v710
          %v712 = vrot.slane %v707, %v711
          %714 = vxpose.xlu0.c.b16.start [1/8] %v701, 128
          %715 = vxpose.xlu0.c.b16.cont [2/8] %v702, 128
          %716 = vxpose.xlu0.c.b16.cont [3/8] 0, 128
          %717 = vxpose.xlu0.c.b16.cont [4/8] 0, 128
          %718 = vxpose.xlu0.c.b16.cont [5/8] 0, 128
          %719 = vxpose.xlu0.c.b16.cont [6/8] 0, 128
          %720 = vxpose.xlu0.c.b16.cont [7/8] 0, 128
          %721 = vxpose.xlu0.c.b16.end [8/8] 0, 128
          %v722 = vpop.trf.xlu0
          %v723 = vpop.trf.xlu0
          %v724 = vpop.trf.xlu0
          %v725 = vpop.trf.xlu0
          %v726 = vpop.trf.xlu0
          %v727 = vpop.trf.xlu0
          %v728 = vpop.trf.xlu0
          %v729 = vpop.trf.xlu0
          %v734 = vunpack.c.l.b16 %v703
          %v735 = vunpack.c.l.b16 %v704
          %v736 = vunpack.c.l.b16 %v705
          %v737 = vunpack.c.l.b16 %v706
          %v738 = vpack.c.b16 %v735, %v734
          %v739 = vpack.c.b16 %v737, %v736
          %v743 = vsel %vm394, %v722, 0
          %745 = vmatprep.subr.bf16.mxu0 0
          %746 = vmatpush1.bf16.msra.mxu0 0
          %747 = vmatprep.subr.bf16.mxu0 0
          %748 = vmatpush1.bf16.msra.mxu0 0
          %749 = vmatprep.subr.bf16.mxu0 0
          %750 = vmatpush1.bf16.msra.mxu0 0
          %751 = vmatprep.subr.bf16.mxu0 0
          %752 = vmatpush1.bf16.msra.mxu0 0
          %753 = vmatprep.subr.bf16.mxu0 0
          %754 = vmatpush1.bf16.msra.mxu0 0
          %755 = vmatprep.subr.bf16.mxu0 0
          %756 = vmatpush1.bf16.msra.mxu0 0
          %757 = vmatprep.subr.bf16.mxu0 0
          %758 = vmatpush1.bf16.msra.mxu0 %v739
          %759 = vmatprep.subr.bf16.mxu0 0
          %760 = vmatpush1.bf16.msra.mxu0 %v738
          %761 = vmatprep.subr.bf16.mxu0 0
          %762 = vmatpush2.bf16.msra.mxu0 0
          %763 = vmatprep.subr.bf16.mxu0 0
          %764 = vmatpush2.bf16.msra.mxu0 0
          %765 = vmatprep.subr.bf16.mxu0 0
          %766 = vmatpush2.bf16.msra.mxu0 0
          %767 = vmatprep.subr.bf16.mxu0 0
          %768 = vmatpush2.bf16.msra.mxu0 0
          %769 = vmatprep.subr.bf16.mxu0 0
          %770 = vmatpush2.bf16.msra.mxu0 0
          %771 = vmatprep.subr.bf16.mxu0 0
          %772 = vmatpush2.bf16.msra.mxu0 0
          %773 = vmatprep.subr.bf16.mxu0 0
          %774 = vmatpush2.bf16.msra.mxu0 0
          %775 = vmatprep.subr.bf16.mxu0 0
          %776 = vmatpush2.bf16.msra.mxu0 0
          %777 = vmatprep.mubr.bf16.mxu0 0
          %778 = vmatmul.mubr.bf16.gmra.mxu0 %v743
          %v779 = vpop.f32.mrf.mxu0
          %v780 = vadd.f32 %v712, %v779
          %v781 = vpop.f32.mrf.mxu0
          %v782 = vpop.f32.mrf.mxu0
          %v783 = vadd.f32 %v712, %v782
          %v784 = vpop.f32.mrf.mxu0
          %785 = vdwg.mxu0
          %786 = vmax.xlane.f32.xlu0 %v780
          %v787 = vpop.xlane.xlu0 %786
          %788 = vmax.xlane.f32.xlu0 %v783
          %v789 = vpop.xlane.xlu0 %788
          %v790 = vsub.f32 %v780, %v787
          %v791 = vsub.f32 %v783, %v789
          %v792 = vmul.f32 %v790, 1.442695
          %v793 = vpow.pop %v792
          %v794 = vmul.f32 %v791, 1.442695
          %v795 = vpow.pop %v794
          %796 = vadd.xlane.f32.xlu0 %v793
          %v797 = vpop.xlane.xlu0 %796
          %798 = vadd.xlane.f32.xlu0 %v795
          %v799 = vpop.xlane.xlu0 %798
          %v800 = vrcp.pop %v797
          %v801 = vrcp.pop %v799
          %v802 = vmul.f32 %v793, %v800
          %v803 = vmul.f32 %v795, %v801
          %v804 = vpack.c.bf16 %v803, %v802
          %v806 = vunpack.c.l.b16 %v804
          %v807 = vunpack.c.h.b16 %v804
          %v808 = vpack.c.b16 %v806, %v806
          %v809 = vpack.c.b16 %v807, %v807
          %812 = vst [vmem:[%s340] sm:$0xf] %v808
          %813 = vst [vmem:[%s340 + $0x4] sm:$0xf] %v809
        $region56: #{tpu_custom_call.1} parent=43 // pred_fallthru
          _
        %s814 = sand.u32 %s188, 1
        %s815 = scalar_lea.sflag [#allocation5], %s814
        %s816 = sand.u32 %s188, 1
        %s817 = smul.addr %s816, 32
        %s818 = scalar_lea.vmem [#allocation6], %s817
        %s819 = sand.u32 %s214, 1
        %s820 = scalar_lea.sflag [#allocation8], %s819
        %s821 = sand.u32 %s214, 1
        %s822 = smul.addr %s821, 8
        %s823 = scalar_lea.vmem [#allocation7], %s822
        // Predicated region
        $region57: #{tpu_custom_call.1} parent=43 // pred_check
          %p824 = pneg %p198
        $region58: #{tpu_custom_call.1} parent=43 // pred_check_branch
          %826 = sbr.rel (%p824) target = $region60
        $region59: #{tpu_custom_call.1} parent=43 // pred_region
          %s827 = smul.u32 8, %s33
          %s829 = ssub.s32 512, 512
          %830 = vsyncadd %s815, %s829
          %s831 = smul.addr %s32, 8
          %s832 = sadd.s32 %s827, %s831
          %s833 = smul.addr %s832, 64
          %s834 = scalar_lea.hbm %s6, %s833
          %s835 = sshll.u32 %s818, 4
          %s836 = int_to_ptr.vmem [resolvable:$true] %s835
          %841 = dma.vmem_to_hbm [thread:$0]  %s836, 512, %s834, %s815, 64, 64, 4
        $region60: #{tpu_custom_call.1} parent=43 // pred_fallthru
          _
        // Predicated region
        $region61: #{tpu_custom_call.1} parent=43 // pred_check
          %p842 = pneg %p224
        $region62: #{tpu_custom_call.1} parent=43 // pred_check_branch
          %844 = sbr.rel (%p842) target = $region64
        $region63: #{tpu_custom_call.1} parent=43 // pred_region
          %s846 = ssub.s32 128, 128
          %847 = vsyncadd %s820, %s846
          %s848 = smul.addr %s32, 2
          %s849 = smul.addr %s848, 64
          %s850 = scalar_lea.hbm %s7, %s849
          %s851 = sshll.u32 %s823, 4
          %s852 = int_to_ptr.vmem [resolvable:$true] %s851
          %857 = dma.vmem_to_hbm [thread:$0]  %s852, 128, %s850, %s820, 64, 64, 4
        $region64: #{tpu_custom_call.1} parent=43 // pred_fallthru
          _
      $region44: #{tpu_custom_call.1} parent=5 // pred_fallthru
        _
      %p858 = scmp.le.s32.totalorder 2, %s23
      // Predicated region
      $region65: #{tpu_custom_call.1} parent=5 // pred_check
        %p859 = pneg %p858
      $region66: #{tpu_custom_call.1} parent=5 // pred_check_branch
        %861 = sbr.rel (%p859) target = $region68
      $region67: #{tpu_custom_call.1} parent=5 // pred_region
        %s862 = ssub.s32 %s23, 2
        // Predicated region
        $region69: #{tpu_custom_call.1} parent=67 // pred_check
          %p863 = pneg %p204
        $region70: #{tpu_custom_call.1} parent=67 // pred_check_branch
          %865 = sbr.rel (%p863) target = $region72
        $region71: #{tpu_custom_call.1} parent=67 // pred_region
          %s866 = sand.u32 %s189, 1
          %s867 = scalar_lea.sflag [#allocation5], %s866
          %s868 = sand.u32 %s189, 1
          %s869 = smul.addr %s868, 32
          %s870 = scalar_lea.vmem [#allocation6], %s869
          %871 = dma.done %s867, 512
        $region72: #{tpu_custom_call.1} parent=67 // pred_fallthru
          _
        // Predicated region
        $region73: #{tpu_custom_call.1} parent=67 // pred_check
          %p872 = pneg %p230
        $region74: #{tpu_custom_call.1} parent=67 // pred_check_branch
          %874 = sbr.rel (%p872) target = $region76
        $region75: #{tpu_custom_call.1} parent=67 // pred_region
          %s875 = sand.u32 %s215, 1
          %s876 = scalar_lea.sflag [#allocation8], %s875
          %s877 = sand.u32 %s215, 1
          %s878 = smul.addr %s877, 8
          %s879 = scalar_lea.vmem [#allocation7], %s878
          %880 = dma.done %s876, 128
        $region76: #{tpu_custom_call.1} parent=67 // pred_fallthru
          _
      $region68: #{tpu_custom_call.1} parent=5 // pred_fallthru
        _
    $region6: #{tpu_custom_call.1} parent=1 // loop_footer
      %s27 = sadd.s32 1, %s23
    $region7: #{tpu_custom_call.1} parent=1 // loop_footer_branch
      %22 = sbr.rel target = $region3
    $region8: #{tpu_custom_call.1} parent=1 // loop_exit
      _
    %881 = vsyncpa [#allocation4], 1
    %s882 = scalar_lea.sflag [#allocation4], 1
    %883 = vsyncpa %s882, 1
    %884 = vsyncpa [#allocation5], 1
    %s885 = scalar_lea.sflag [#allocation5], 1
    %886 = vsyncpa %s885, 1
    %887 = vsyncpa [#allocation8], 1
    %s888 = scalar_lea.sflag [#allocation8], 1
    %889 = vsyncpa %s888, 1

</llo_original>
